<compile_context>
chip_gen: v7x
topology: tpu7x:2x2x1
jax: 0.10.0
libtpu: 0.0.40
codegen_flags: <defaults>
</compile_context>

<pallas_src>
import jax
import jax.numpy as jnp
from jax.experimental import pallas as pl
from jax.experimental.pallas import tpu as pltpu

M = 1000.0


def _round_up(x, m):
    return ((x + m - 1) // m) * m


def _pad_to(a, shape):
    out = jnp.zeros(shape, a.dtype)
    return out.at[tuple(slice(0, d) for d in a.shape)].set(a)


def _choose_node_tiles(num_nodes):
    """(n_pad, tm, tk) for the tiled A_norm aggregation."""
    n128 = _round_up(num_nodes, 128)
    if n128 <= 512:
        return n128, n128, n128          # single tile for small graphs
    # 256-row x 512-lane A tiles (512 KiB f32): double-buffered this stays well
    # under the 32 MiB default scoped-VMEM limit on v6e and v7x.
    return _round_up(num_nodes, 512), 256, 512


# ---------------------------------------------------------------------------
# Kernel 1: fused GCN stack   out_l = relu(A_norm @ (act_{l-1} @ W_l) + b_l)
# grid = (n_conv, n_pad//tm, n_pad//tk), all axes "arbitrary" (serial deps).
# ---------------------------------------------------------------------------
def gcn_stack_kernel(x_ref, a_ref, w_ref, b_ref, o_ref, act_ref, xw_ref, acc_ref):
    l = pl.program_id(0)
    r = pl.program_id(1)
    k = pl.program_id(2)
    nk = pl.num_programs(2)
    tm = acc_ref.shape[0]
    tk = a_ref.shape[1]

    # Seed the resident activation with the (padded) node features once.
    @pl.when((l == 0) & (r == 0) & (k == 0))
    def _():
        act_ref[...] = x_ref[...]

    # Once per layer: XW = act @ W_l  (small: N_pad x h_pad, stays in VMEM).
    @pl.when((r == 0) & (k == 0))
    def _():
        xw_ref[...] = jnp.dot(act_ref[...], w_ref[0],
                              preferred_element_type=jnp.float32)

    # Tiled aggregation over the dense normalized adjacency: acc += A[r,k] @ XW[k]
    @pl.when(k == 0)
    def _():
        acc_ref[...] = jnp.zeros_like(acc_ref)

    koff = pl.multiple_of(k * tk, tk)
    acc_ref[...] += jnp.dot(a_ref[...], xw_ref[pl.ds(koff, tk), :],
                            preferred_element_type=jnp.float32)

    # Finalize this row tile: bias + ReLU, update the resident activation.
    @pl.when(k == nk - 1)
    def _():
        new_act = jnp.maximum(acc_ref[...] + b_ref[0], 0.0)
        roff = pl.multiple_of(r * tm, tm)
        act_ref[pl.ds(roff, tm), :] = new_act
        o_ref[0] = new_act


def gcn_stack(a_norm_pad, x_pad, w_stack, b_stack, tm, tk):
    n_conv, h_pad, _ = w_stack.shape
    n_pad = x_pad.shape[0]
    grid = (n_conv, n_pad // tm, n_pad // tk)
    out = pl.pallas_call(
        gcn_stack_kernel,
        out_shape=jax.ShapeDtypeStruct((n_conv, n_pad, h_pad), jnp.float32),
        grid_spec=pltpu.PrefetchScalarGridSpec(
            num_scalar_prefetch=0,
            grid=grid,
            in_specs=[
                pl.BlockSpec((n_pad, h_pad), lambda l, r, k: (0, 0)),        # x (resident)
                pl.BlockSpec((tm, tk), lambda l, r, k: (r, k)),              # A_norm tile
                pl.BlockSpec((1, h_pad, h_pad), lambda l, r, k: (l, 0, 0)),  # W_l
                pl.BlockSpec((1, 1, h_pad), lambda l, r, k: (l, 0, 0)),      # b_l
            ],
            out_specs=pl.BlockSpec((1, tm, h_pad), lambda l, r, k: (l, r, 0)),
            scratch_shapes=[
                pltpu.VMEM((n_pad, h_pad), jnp.float32),   # resident activation
                pltpu.VMEM((n_pad, h_pad), jnp.float32),   # XW of current layer
                pltpu.VMEM((tm, h_pad), jnp.float32),      # row-tile accumulator
            ],
        ),
        compiler_params=pltpu.CompilerParams(
            dimension_semantics=("arbitrary", "arbitrary", "arbitrary")),
    )(x_pad, a_norm_pad, w_stack, b_stack)
    return out[-1]   # only the last layer's activation is needed downstream


# ---------------------------------------------------------------------------
# Kernel 2: fused edge path (edge_emb -> edge_action_rep -> edge_action_prob
# -> selection mask).  Everything is edge-major on the LANE axis so the output
# (1, E_pad) is lane-dense.  grid = (E_pad // te,), "parallel".
# ---------------------------------------------------------------------------
def edge_path_kernel(xs_ref, xd_ref, ea_ref, sel_ref,
                     wemb_ref, bemb_ref, wrep_ref, brep_ref,
                     wg_ref, ws_ref, g_ref, s_ref,
                     w1_ref, b1_ref, w2_ref, b2_ref,
                     o_ref, cat_ref):
    h = xs_ref.shape[0]

    # edge_emb: Linear(edge_attr)                     -> (h, TE)
    emb = (jnp.dot(wemb_ref[...], ea_ref[...], preferred_element_type=jnp.float32)
           + bemb_ref[...])

    # cat([x_src, x_dst, edge_emb]) along the feature (sublane) axis, then one
    # fused K matmul for edge_action_rep (instead of 3 thin-K matmuls).
    cat_ref[0:h, :] = xs_ref[...]
    cat_ref[h:2 * h, :] = xd_ref[...]
    cat_ref[2 * h:3 * h, :] = emb
    rep = jnp.maximum(
        jnp.dot(wrep_ref[...], cat_ref[...], preferred_element_type=jnp.float32)
        + brep_ref[...], 0.0)

    # graph_rep / subgraph_rep contributions fold into a per-feature bias column
    # (== torch .repeat(E, 1) broadcast), computed once per tile, not per edge.
    bias1 = (jnp.dot(wg_ref[...], g_ref[...], preferred_element_type=jnp.float32)
             + jnp.dot(ws_ref[...], s_ref[...], preferred_element_type=jnp.float32)
             + b1_ref[...])
    h1 = jnp.maximum(
        jnp.dot(w1_ref[...], rep, preferred_element_type=jnp.float32) + bias1, 0.0)

    # Final 1-row matmul -> lane-dense (1, TE) logits; stable EUP sigmoid.
    logit = (jnp.dot(w2_ref[...], h1, preferred_element_type=jnp.float32)
             + b2_ref[...])
    prob = 0.5 * (jnp.tanh(0.5 * logit) + 1.0)

    # action_prob = -M everywhere except selected edges.
    o_ref[...] = jnp.where(sel_ref[...] > 0.0, prob, -M)


def edge_path(xs_t, xd_t, ea_t, sel, g_col, s_col, p, te):
    h_pad, e_pad = xs_t.shape
    a_pad = ea_t.shape[0]
    rep_pad = g_col.shape[0]
    grid = (e_pad // te,)

    def edge_spec(rows):
        return pl.BlockSpec((rows, te), lambda e: (0, e))

    def full_spec(shape):
        return pl.BlockSpec(shape, lambda e: (0,) * len(shape))

    return pl.pallas_call(
        edge_path_kernel,
        out_shape=jax.ShapeDtypeStruct((1, e_pad), jnp.float32),
        grid_spec=pltpu.PrefetchScalarGridSpec(
            num_scalar_prefetch=0,
            grid=grid,
            in_specs=[
                edge_spec(h_pad),                 # x_src^T
                edge_spec(h_pad),                 # x_dst^T
                edge_spec(a_pad),                 # edge_attr^T
                edge_spec(1),                     # selection mask
                full_spec((h_pad, a_pad)), full_spec((h_pad, 1)),      # edge_emb
                full_spec((h_pad, 3 * h_pad)), full_spec((h_pad, 1)),  # edge_action_rep
                full_spec((h_pad, rep_pad)), full_spec((h_pad, rep_pad)),
                full_spec((rep_pad, 1)), full_spec((rep_pad, 1)),      # g / s reps
                full_spec((h_pad, h_pad)), full_spec((h_pad, 1)),      # prob layer 1
                full_spec((1, h_pad)), full_spec((1, 1)),              # prob layer 2
            ],
            out_specs=pl.BlockSpec((1, te), lambda e: (0, e)),
            scratch_shapes=[pltpu.VMEM((3 * h_pad, te), jnp.float32)],
        ),
        compiler_params=pltpu.CompilerParams(
            dimension_semantics=("parallel",)),
    )(xs_t, xd_t, ea_t, sel,
      p["wemb_t"], p["bemb"], p["wrep_t"], p["brep"],
      p["wg_t"], p["ws_t"], g_col, s_col,
      p["w1_t"], p["b1"], p["w2_row"], p["b2"])


# ---------------------------------------------------------------------------
# Glue: params (padded / transposed kernel layouts), adjacency, forward.
# ---------------------------------------------------------------------------
def init_params(key, n_conv, n_hidden, n_input, edge_attr_dim, rep_dim):
    h_pad = _round_up(max(n_hidden, n_input), 128)
    a_pad = _round_up(edge_attr_dim, 8)
    rep_pad = _round_up(rep_dim, 8)

    keys = iter(jax.random.split(key, n_conv + 8))

    def glorot(k, shape):
        lim = jnp.sqrt(6.0 / (shape[0] + shape[1]))
        return jax.random.uniform(k, shape, jnp.float32, -lim, lim)

    # GCN stack: every layer padded into a common (h_pad, h_pad) slab so the
    # whole stack runs as one pallas_call.  Padded rows/cols are zero.
    conv_w = jnp.zeros((n_conv, h_pad, h_pad), jnp.float32)
    in_dim = n_input
    for i in range(n_conv):
        w = glorot(next(keys), (in_dim, n_hidden))
        conv_w = conv_w.at[i, :in_dim, :n_hidden].set(w)
        in_dim = n_hidden
    conv_b = jnp.zeros((n_conv, 1, h_pad), jnp.float32)

    # edge_emb: Linear(edge_attr_dim -> n_hidden), transposed (features-major).
    wemb_t = jnp.zeros((h_pad, a_pad), jnp.float32).at[:n_hidden, :edge_attr_dim].set(
        glorot(next(keys), (edge_attr_dim, n_hidden)).T)
    bemb = jnp.zeros((h_pad, 1), jnp.float32)

    # edge_action_rep: Linear(3*n_hidden -> n_hidden) as ONE fused transposed
    # weight [W_src | W_dst | W_emb]^T laid out in h_pad-wide segments.
    wrep_t = jnp.zeros((h_pad, 3 * h_pad), jnp.float32)
    for j in range(3):
        wj = glorot(next(keys), (n_hidden, n_hidden))
        wrep_t = wrep_t.at[:n_hidden, j * h_pad:j * h_pad + n_hidden].set(wj.T)
    brep = jnp.zeros((h_pad, 1), jnp.float32)

    # edge_action_prob layer 1 split: graph-rep / subgraph-rep / edge-rep blocks.
    wg_t = jnp.zeros((h_pad, rep_pad), jnp.float32).at[:n_hidden, :rep_dim].set(
        glorot(next(keys), (rep_dim, n_hidden)).T)
    ws_t = jnp.zeros((h_pad, rep_pad), jnp.float32).at[:n_hidden, :rep_dim].set(
        glorot(next(keys), (rep_dim, n_hidden)).T)
    w1_t = jnp.zeros((h_pad, h_pad), jnp.float32).at[:n_hidden, :n_hidden].set(
        glorot(next(keys), (n_hidden, n_hidden)).T)
    b1 = jnp.zeros((h_pad, 1), jnp.float32)
    # edge_action_prob layer 2: Linear(n_hidden -> 1), stored as a lane row.
    w2_row = jnp.zeros((1, h_pad), jnp.float32).at[0, :n_hidden].set(
        glorot(next(keys), (n_hidden, 1))[:, 0])
    b2 = jnp.zeros((1, 1), jnp.float32)

    return dict(h_pad=h_pad, a_pad=a_pad, rep_pad=rep_pad, n_hidden=n_hidden,
                conv_w=conv_w, conv_b=conv_b,
                wemb_t=wemb_t, bemb=bemb, wrep_t=wrep_t, brep=brep,
                wg_t=wg_t, ws_t=ws_t, w1_t=w1_t, b1=b1,
                w2_row=w2_row, b2=b2)


def gcn_norm_adj(edge_index, num_nodes, n_pad):
    # D^{-1/2}(A + I)D^{-1/2} with A[dst, src] = 1 (PyG GCNConv default norm).
    # Padded nodes only carry a self-loop, so they never influence real rows.
    # TODO(synk): for very large / sparse graphs replace this dense (N,N) matrix
    # with an edge-index gather + segment-sum formulation (scalar-prefetched
    # indices + data-dependent DMA) to drop the O(N^2) HBM traffic per layer.
    src, dst = edge_index[0], edge_index[1]
    a = jnp.zeros((n_pad, n_pad), jnp.float32)
    a = a.at[dst, src].add(1.0)
    a = a + jnp.eye(n_pad, dtype=jnp.float32)
    dinv = jax.lax.rsqrt(a.sum(axis=1))
    return dinv[:, None] * a * dinv[None, :]


def graph_agent_forward(params, x, edge_index, full_edge_index, edge_attr,
                        graph_rep, full_graph_rep, state, *, te=256):
    """Mirrors GraphAgent.forward with actions=None, N=1 (one subgraph copy).

    graph_rep / full_graph_rep stand in for gnn_model.get_graph_rep(...), which
    is an external detached model output in the reference code.
    """
    h_pad, a_pad, rep_pad = params["h_pad"], params["a_pad"], params["rep_pad"]
    num_nodes = x.shape[0]
    num_edges = full_edge_index.shape[1]

    n_pad, tm, tk = _choose_node_tiles(num_nodes)
    e_pad = _round_up(num_edges, te)

    # --- fused GCN stack (activations stay VMEM resident across layers) -----
    x_pad = _pad_to(x.astype(jnp.float32), (n_pad, h_pad))
    a_norm = gcn_norm_adj(edge_index, num_nodes, n_pad)
    node_out = gcn_stack(a_norm, x_pad, params["conv_w"], params["conv_b"], tm, tk)

    # --- glue: gather edge endpoints, present edge-major on the lane axis ---
    xs_t = _pad_to(node_out[full_edge_index[0]].T, (h_pad, e_pad))
    xd_t = _pad_to(node_out[full_edge_index[1]].T, (h_pad, e_pad))
    ea_t = _pad_to(edge_attr.astype(jnp.float32).T, (a_pad, e_pad))
    sel = _pad_to(state.astype(jnp.float32).reshape(1, num_edges), (1, e_pad))
    g_col = _pad_to(full_graph_rep.astype(jnp.float32).reshape(-1, 1), (rep_pad, 1))
    s_col = _pad_to(graph_rep.astype(jnp.float32).reshape(-1, 1), (rep_pad, 1))

    # --- fused edge path (emb -> rep -> prob -> selection mask) -------------
    probs = edge_path(xs_t, xd_t, ea_t, sel, g_col, s_col, params, te)
    action_prob = probs[0, :num_edges]

    # torch returns a list of len(selections) of (E,) vectors, plus None.
    return [action_prob], None


# TODO(synk): gnn_model.get_graph_rep is an external detached model; graph reps
# are supplied as inputs.  foward_multisteps / actions!=None multi-selection
# paths and torch.cuda.empty_cache have no kernel equivalent.
# TODO(synk): optional bf16 MXU inputs (f32 accumulate) would halve HBM/VMEM
# traffic on v6e/v7x; kept f32 here to match reference numerics exactly.

if __name__ == "__main__":
    n_conv, n_hidden, n_input = 3, 32, 8
    edge_attr_dim, rep_dim = 4, 32
    num_nodes, num_edges = 16, 24

    key = jax.random.PRNGKey(0)
    k1, k2, k3, k4, k5 = jax.random.split(key, 5)

    params = init_params(k1, n_conv, n_hidden, n_input, edge_attr_dim, rep_dim)

    x = jax.random.normal(k2, (num_nodes, n_input), jnp.float32)
    src = jnp.arange(num_edges, dtype=jnp.int32) % num_nodes
    dst = (jnp.arange(num_edges, dtype=jnp.int32) * 3 + 1) % num_nodes
    edge_index = jnp.stack([src, dst])                        # graph.edge_index
    full_edge_index = edge_index                              # full_graph.edge_index (N=1)
    edge_attr = jax.random.normal(k3, (num_edges, edge_attr_dim), jnp.float32)
    graph_rep = jax.random.normal(k4, (rep_dim,), jnp.float32)        # get_graph_rep(graph)
    full_graph_rep = jax.random.normal(k5, (rep_dim,), jnp.float32)   # get_graph_rep(full_graph)
    state = (jnp.arange(num_edges) % 2 == 0)                  # boolean edge selection

    edge_preds, _ = graph_agent_forward(params, x, edge_index, full_edge_index,
                                        edge_attr, graph_rep, full_graph_rep, state)
    jax.block_until_ready(edge_preds[0])
    assert edge_preds[0].shape == (num_edges,)
    print("KERNEL_OK")
</pallas_src>

<mosaic_0001>
module attributes {stable_mosaic.version = 11 : i64} {
  func.func @gcn_stack_kernel(%arg0: i32, %arg1: i32, %arg2: i32, %arg3: memref<128x128xf32, #tpu.memory_space<vmem>>, %arg4: memref<128x128xf32, #tpu.memory_space<vmem>>, %arg5: memref<1x128x128xf32, #tpu.memory_space<vmem>>, %arg6: memref<1x1x128xf32, #tpu.memory_space<vmem>>, %arg7: memref<1x128x128xf32, #tpu.memory_space<vmem>>, %arg8: memref<128x128xf32, #tpu.memory_space<vmem>>, %arg9: memref<128x128xf32, #tpu.memory_space<vmem>>, %arg10: memref<128x128xf32, #tpu.memory_space<vmem>>) attributes {dimension_semantics = [#tpu.dimension_semantics<arbitrary>, #tpu.dimension_semantics<arbitrary>, #tpu.dimension_semantics<arbitrary>], iteration_bounds = array<i64: 3, 1, 1>, scalar_prefetch = 0 : i64, scratch_operands = 3 : i64, tpu.core_type = #tpu.core_type<tc>, window_params = [{pipeline_mode = #tpu.pipeline_mode<synchronous>, transform_indices = @transform_0, window_bounds = array<i64: 128, 128>}, {transform_indices = @transform_1, window_bounds = array<i64: 128, 128>}, {transform_indices = @transform_2, window_bounds = array<i64: 1, 128, 128>}, {transform_indices = @transform_3, window_bounds = array<i64: 1, 1, 128>}, {transform_indices = @transform_4, window_bounds = array<i64: 1, 128, 128>}]} {
    %c0_i32 = arith.constant 0 : i32
    %0 = arith.cmpi eq, %arg0, %c0_i32 : i32
    %c0_i32_0 = arith.constant 0 : i32
    %1 = arith.cmpi eq, %arg1, %c0_i32_0 : i32
    %2 = arith.andi %0, %1 : i1
    %c0_i32_1 = arith.constant 0 : i32
    %3 = arith.cmpi eq, %arg2, %c0_i32_1 : i32
    %4 = arith.andi %2, %3 : i1
    %5 = arith.extui %4 : i1 to i32
    %c0_i32_2 = arith.constant 0 : i32
    %6 = arith.cmpi ne, %5, %c0_i32_2 : i32
    scf.if %6 {
      %c0_16 = arith.constant 0 : index
      %c0_17 = arith.constant 0 : index
      %27 = vector.load %arg3[%c0_16, %c0_17] : memref<128x128xf32, #tpu.memory_space<vmem>>, vector<128x128xf32>
      %c0_18 = arith.constant 0 : index
      %c0_19 = arith.constant 0 : index
      %28 = vector.load %arg8[%c0_18, %c0_19] : memref<128x128xf32, #tpu.memory_space<vmem>>, vector<128x128xf32>
      tpu.vector_store %arg8[%c0_18, %c0_19], %27 {strides = array<i32>} : memref<128x128xf32, #tpu.memory_space<vmem>>, vector<128x128xf32>,
    } else {
    }
    %c0_i32_3 = arith.constant 0 : i32
    %7 = arith.cmpi eq, %arg1, %c0_i32_3 : i32
    %c0_i32_4 = arith.constant 0 : i32
    %8 = arith.cmpi eq, %arg2, %c0_i32_4 : i32
    %9 = arith.andi %7, %8 : i1
    %10 = arith.extui %9 : i1 to i32
    %c0_i32_5 = arith.constant 0 : i32
    %11 = arith.cmpi ne, %10, %c0_i32_5 : i32
    scf.if %11 {
      %c0_16 = arith.constant 0 : index
      %c0_17 = arith.constant 0 : index
      %27 = vector.load %arg8[%c0_16, %c0_17] : memref<128x128xf32, #tpu.memory_space<vmem>>, vector<128x128xf32>
      %c0_18 = arith.constant 0 : index
      %c0_19 = arith.constant 0 : index
      %c0_20 = arith.constant 0 : index
      %28 = vector.load %arg5[%c0_18, %c0_19, %c0_20] : memref<1x128x128xf32, #tpu.memory_space<vmem>>, vector<1x128x128xf32>
      %29 = vector.shape_cast %28 : vector<1x128x128xf32> to vector<128x128xf32>
      %cst_21 = arith.constant dense<0.000000e+00> : vector<128x128xf32>
      %30 = tpu.matmul %27, %29, %cst_21 {dimension_numbers = #tpu.dot_dimension_numbers<[1], [0], [0], [1], [0, 0, 1, 1], [], []>} : vector<128x128xf32>, vector<128x128xf32>, vector<128x128xf32> -> vector<128x128xf32>
      %c0_22 = arith.constant 0 : index
      %c0_23 = arith.constant 0 : index
      %31 = vector.load %arg9[%c0_22, %c0_23] : memref<128x128xf32, #tpu.memory_space<vmem>>, vector<128x128xf32>
      tpu.vector_store %arg9[%c0_22, %c0_23], %30 {strides = array<i32>} : memref<128x128xf32, #tpu.memory_space<vmem>>, vector<128x128xf32>,
    } else {
    }
    %c0_i32_6 = arith.constant 0 : i32
    %12 = arith.cmpi eq, %arg2, %c0_i32_6 : i32
    %13 = arith.extui %12 : i1 to i32
    %c0_i32_7 = arith.constant 0 : i32
    %14 = arith.cmpi ne, %13, %c0_i32_7 : i32
    scf.if %14 {
      %cst_16 = arith.constant 0.000000e+00 : f32
      %27 = vector.broadcast %cst_16 : f32 to vector<128x128xf32>
      %c0_17 = arith.constant 0 : index
      %c0_18 = arith.constant 0 : index
      %28 = vector.load %arg10[%c0_17, %c0_18] : memref<128x128xf32, #tpu.memory_space<vmem>>, vector<128x128xf32>
      tpu.vector_store %arg10[%c0_17, %c0_18], %27 {strides = array<i32>} : memref<128x128xf32, #tpu.memory_space<vmem>>, vector<128x128xf32>,
    } else {
    }
    %c128_i32 = arith.constant 128 : i32
    %15 = arith.muli %arg2, %c128_i32 : i32
    %16 = tpu.assume_multiple %15, 128 : i32
    %c0 = arith.constant 0 : index
    %c0_8 = arith.constant 0 : index
    %17 = vector.load %arg10[%c0, %c0_8] : memref<128x128xf32, #tpu.memory_space<vmem>>, vector<128x128xf32>
    %c0_9 = arith.constant 0 : index
    %c0_10 = arith.constant 0 : index
    %18 = vector.load %arg4[%c0_9, %c0_10] : memref<128x128xf32, #tpu.memory_space<vmem>>, vector<128x128xf32>
    %19 = arith.index_cast %16 : i32 to index
    %c0_11 = arith.constant 0 : index
    %20 = vector.load %arg9[%19, %c0_11] : memref<128x128xf32, #tpu.memory_space<vmem>>, vector<128x128xf32>
    %cst = arith.constant dense<0.000000e+00> : vector<128x128xf32>
    %21 = tpu.matmul %18, %20, %cst {dimension_numbers = #tpu.dot_dimension_numbers<[1], [0], [0], [1], [0, 0, 1, 1], [], []>} : vector<128x128xf32>, vector<128x128xf32>, vector<128x128xf32> -> vector<128x128xf32>
    %22 = arith.addf %17, %21 : vector<128x128xf32>
    %c0_12 = arith.constant 0 : index
    %c0_13 = arith.constant 0 : index
    %23 = vector.load %arg10[%c0_12, %c0_13] : memref<128x128xf32, #tpu.memory_space<vmem>>, vector<128x128xf32>
    tpu.vector_store %arg10[%c0_12, %c0_13], %22 {strides = array<i32>} : memref<128x128xf32, #tpu.memory_space<vmem>>, vector<128x128xf32>,
    %c0_i32_14 = arith.constant 0 : i32
    %24 = arith.cmpi eq, %arg2, %c0_i32_14 : i32
    %25 = arith.extui %24 : i1 to i32
    %c0_i32_15 = arith.constant 0 : i32
    %26 = arith.cmpi ne, %25, %c0_i32_15 : i32
    scf.if %26 {
      %c0_16 = arith.constant 0 : index
      %c0_17 = arith.constant 0 : index
      %27 = vector.load %arg10[%c0_16, %c0_17] : memref<128x128xf32, #tpu.memory_space<vmem>>, vector<128x128xf32>
      %c0_18 = arith.constant 0 : index
      %c0_19 = arith.constant 0 : index
      %c0_20 = arith.constant 0 : index
      %28 = vector.load %arg6[%c0_18, %c0_19, %c0_20] : memref<1x1x128xf32, #tpu.memory_space<vmem>>, vector<1x1x128xf32>
      %29 = vector.shape_cast %28 : vector<1x1x128xf32> to vector<1x128xf32>
      %30 = vector.broadcast %29 : vector<1x128xf32> to vector<128x128xf32>
      %31 = arith.addf %27, %30 : vector<128x128xf32>
      %cst_21 = arith.constant 0.000000e+00 : f32
      %32 = vector.broadcast %cst_21 : f32 to vector<128x128xf32>
      %33 = arith.maximumf %31, %32 : vector<128x128xf32>
      %c128_i32_22 = arith.constant 128 : i32
      %34 = arith.muli %arg1, %c128_i32_22 : i32
      %35 = tpu.assume_multiple %34, 128 : i32
      %36 = arith.index_cast %35 : i32 to index
      %c0_23 = arith.constant 0 : index
      %37 = vector.load %arg8[%36, %c0_23] : memref<128x128xf32, #tpu.memory_space<vmem>>, vector<128x128xf32>
      tpu.vector_store %arg8[%36, %c0_23], %33 {strides = array<i32>} : memref<128x128xf32, #tpu.memory_space<vmem>>, vector<128x128xf32>,
      %c0_24 = arith.constant 0 : index
      %c0_25 = arith.constant 0 : index
      %c0_26 = arith.constant 0 : index
      %38 = vector.load %arg7[%c0_24, %c0_25, %c0_26] : memref<1x128x128xf32, #tpu.memory_space<vmem>>, vector<1x128x128xf32>
      %39 = vector.shape_cast %38 : vector<1x128x128xf32> to vector<128x128xf32>
      %40 = vector.shape_cast %33 : vector<128x128xf32> to vector<1x128x128xf32>
      tpu.vector_store %arg7[%c0_24, %c0_25, %c0_26], %40 {strides = array<i32>} : memref<1x128x128xf32, #tpu.memory_space<vmem>>, vector<1x128x128xf32>,
    } else {
    }
    return
  }
  func.func @transform_0(%arg0: i32, %arg1: i32, %arg2: i32) -> (i32, i32) {
    %c0_i32 = arith.constant 0 : i32
    %c0_i32_0 = arith.constant 0 : i32
    %c0_i32_1 = arith.constant 0 : i32
    return %c0_i32, %c0_i32_0 : i32, i32
  }
  func.func @transform_1(%arg0: i32, %arg1: i32, %arg2: i32) -> (i32, i32) {
    %c0_i32 = arith.constant 0 : i32
    return %arg1, %arg2 : i32, i32
  }
  func.func @transform_2(%arg0: i32, %arg1: i32, %arg2: i32) -> (i32, i32, i32) {
    %c0_i32 = arith.constant 0 : i32
    %c0_i32_0 = arith.constant 0 : i32
    %c0_i32_1 = arith.constant 0 : i32
    return %arg0, %c0_i32, %c0_i32_0 : i32, i32, i32
  }
  func.func @transform_3(%arg0: i32, %arg1: i32, %arg2: i32) -> (i32, i32, i32) {
    %c0_i32 = arith.constant 0 : i32
    %c0_i32_0 = arith.constant 0 : i32
    %c0_i32_1 = arith.constant 0 : i32
    return %arg0, %c0_i32, %c0_i32_0 : i32, i32, i32
  }
  func.func @transform_4(%arg0: i32, %arg1: i32, %arg2: i32) -> (i32, i32, i32) {
    %c0_i32 = arith.constant 0 : i32
    %c0_i32_0 = arith.constant 0 : i32
    return %arg0, %arg1, %c0_i32 : i32, i32, i32
  }
}

</mosaic_0001>

<llo_original>
// kernel: tpu_custom_call.1
$region0: #{tpu_custom_call.1}
  #allocation0 [shape = 'u32[]', space=smem, size = 0x4, offset = 0x4, fixed_abs, tag = 'smem constant byte address 0x4 - core index']
  #allocation1 [shape = 'u32[144,128]{1,0:T(1,128)}', space=vmem, size = 0x12000, scoped, tag = 'internal scratch']
  #allocation2 [shape = 'f32[128,128]{1,0:T(8,128)}', space=vmem, size = 0x10000, scoped, tag = 'scratch operand']
  #allocation3 [shape = 'f32[128,128]{1,0:T(8,128)}', space=vmem, size = 0x10000, scoped, tag = 'scratch operand']
  #allocation4 [shape = 'f32[128,128]{1,0:T(8,128)}', space=vmem, size = 0x10000, scoped, tag = 'scratch operand']
  %s0 = inlined_call_operand.hbm [shape: f32[128,128], index: 0, kind: input, shape index: {}]
  %s1 = inlined_call_operand.hbm [shape: f32[128,128], index: 1, kind: input, shape index: {}]
  %s2 = inlined_call_operand.hbm [shape: f32[3,128,128], index: 2, kind: input, shape index: {}]
  %s3 = inlined_call_operand.vmem [shape: f32[3,1,128], index: 3, kind: input, shape index: {}]
  %s4 = inlined_call_operand.hbm [shape: f32[3,128,128], index: 4, kind: output, shape index: {}]
  %s5 = sld [smem:[#allocation0]]
  $region77: #{tpu_custom_call.1} parent=0
    _
  %s7 = ssub.s32 1, %s5
  %s8 = scalar_select 0, %s7, %s5
  $region1: #{tpu_custom_call.1} parent=0
    #allocation5 [shape = 'u8[65536]{0}', space=vmem, size = 0x10000, scoped, tag = 'input window, operand 0, single buffered']
    #allocation6 [shape = 's32[2]{0}', space=sflag, size = 0x8, scoped, tag = 'scoped memory for tpu_custom_call.1']
    #allocation7 [shape = 's32[2]{0}', space=sflag, size = 0x8, scoped, tag = 'scoped memory for tpu_custom_call.1']
    #allocation8 [shape = 'u8[65536]{0}', space=vmem, size = 0x10000, scoped, tag = 'input window, operand 1, single buffered']
    #allocation9 [shape = 's32[1]{0}', space=sflag, size = 0x4, scoped, tag = 'scoped memory for tpu_custom_call.1']
    #allocation10 [shape = 'u8[131072]{0}', space=vmem, size = 0x20000, scoped, tag = 'input window, operand 2']
    #allocation11 [shape = 'u8[131072]{0}', space=vmem, size = 0x20000, scoped, tag = 'output window, operand 0']
    %9 = vsyncpa [#allocation6], 0
    %10 = vsyncpa [#allocation9], 0
    %11 = vsyncpa [#allocation7], 0
    %s12 = scalar_lea.sflag [#allocation7], 1
    %13 = vsyncpa %s12, 0
    loop: start=0, step=1, limit=5
    $region2: #{tpu_custom_call.1} parent=1 // loop_pre_header
      _
    $region3: #{tpu_custom_call.1} parent=1 // loop_header
      %s15 = sphi 0, %s19
      %p16 = scmp.ge.s32.totalorder %s15, 5
      %s22 = sphi 0, %s41
      %s23 = sphi 0, %s37
      %s24 = sphi 0, %s33
      %s25 = sphi 0, %s22
      %s26 = sphi 0, %s23
      %s27 = sphi 0, %s24
      %s28 = sphi 0, %s25
      %s29 = sphi 0, %s26
      %s30 = sphi 0, %s27
      %s42 = sphi 0, %s42
      %s44 = sphi 0, %s42
      %s45 = sphi 0, %s44
      %s59 = sphi 0, %s45
      %s67 = sphi 0, %s69
      %s70 = sphi 0, %s67
      %s71 = sphi 0, %s70
      %s87 = sphi 0, %s71
      %s93 = sphi 0, %s95
      %s96 = sphi 0, %s93
      %s97 = sphi 0, %s96
      %s113 = sphi 0, %s97
      %s119 = sphi 0, %s121
      %s122 = sphi 0, %s119
      %s123 = sphi 0, %s122
      %s139 = sphi 0, %s123
      %s147 = sphi 0, %s149
      %s150 = sphi 0, %s147
      %s151 = sphi 0, %s150
      %s167 = sphi 0, %s151
    $region4: #{tpu_custom_call.1} parent=1 // loop_header_branch
      %18 = sbr.rel (%p16) target = $region8
    $region5: #{tpu_custom_call.1} parent=1 // loop_body
      %s20 = ssub.s32 %s15, 1
      %s21 = ssub.s32 %s15, 2
      %s31 = sadd.s32 1, %s24
      %p32 = scmp.ge.s32.totalorder %s31, 1
      %s33 = scalar_select %p32, 0, %s31
      %s34 = sadd.s32 1, %s23
      %s35 = scalar_select %p32, %s34, %s23
      %p36 = scmp.ge.s32.totalorder %s35, 1
      %s37 = scalar_select %p36, 0, %s35
      %s38 = sadd.s32 1, %s22
      %s39 = scalar_select %p36, %s38, %s22
      %p40 = scmp.ge.s32.totalorder %s39, 3
      %s41 = scalar_select %p40, 0, %s39
      %s43 = sadd.s32 %s42, 1
      %p46 = scmp.eq.s32.totalorder %s15, 2
      %p47 = scmp.ne.s32.totalorder %s42, %s44
      %p48 = scmp.eq.s32.totalorder %s15, 0
      %p49 = por %p47, %p48
      %p50 = scmp.ne.s32.totalorder %s42, %s44
      %p51 = scmp.eq.s32.totalorder %s20, 2
      %p52 = por %p50, %p51
      %p53 = scmp.ne.s32.totalorder %s44, %s45
      %p54 = scmp.eq.s32.totalorder %s20, 0
      %p55 = por %p53, %p54
      %p56 = scmp.ne.s32.totalorder %s44, %s45
      %p57 = scmp.eq.s32.totalorder %s21, 2
      %p58 = por %p56, %p57
      %p60 = scmp.ne.s32.totalorder %s45, %s59
      %p61 = scmp.eq.s32.totalorder %s21, 0
      %p62 = por %p60, %p61
      %s63 = ssub.s32 %s23, %s37
      %s64 = ssub.s32 %s24, %s33
      %s65 = sor.u32 %s63, %s64
      %p66 = scmp.eq.s32.totalorder %s65, 0
      %s68 = sadd.s32 %s67, 1
      %s69 = scalar_select %p66, %s67, %s68
      %p72 = pneg %p66
      %p73 = scmp.eq.s32.totalorder %s15, 2
      %p74 = por %p72, %p73
      %p75 = scmp.ne.s32.totalorder %s67, %s70
      %p76 = scmp.eq.s32.totalorder %s15, 0
      %p77 = por %p75, %p76
      %p78 = scmp.ne.s32.totalorder %s67, %s70
      %p79 = scmp.eq.s32.totalorder %s20, 2
      %p80 = por %p78, %p79
      %p81 = scmp.ne.s32.totalorder %s70, %s71
      %p82 = scmp.eq.s32.totalorder %s20, 0
      %p83 = por %p81, %p82
      %p84 = scmp.ne.s32.totalorder %s70, %s71
      %p85 = scmp.eq.s32.totalorder %s21, 2
      %p86 = por %p84, %p85
      %p88 = scmp.ne.s32.totalorder %s71, %s87
      %p89 = scmp.eq.s32.totalorder %s21, 0
      %p90 = por %p88, %p89
      %s91 = ssub.s32 %s22, %s41
      %p92 = scmp.eq.s32.totalorder %s91, 0
      %s94 = sadd.s32 %s93, 1
      %s95 = scalar_select %p92, %s93, %s94
      %p98 = pneg %p92
      %p99 = scmp.eq.s32.totalorder %s15, 2
      %p100 = por %p98, %p99
      %p101 = scmp.ne.s32.totalorder %s93, %s96
      %p102 = scmp.eq.s32.totalorder %s15, 0
      %p103 = por %p101, %p102
      %p104 = scmp.ne.s32.totalorder %s93, %s96
      %p105 = scmp.eq.s32.totalorder %s20, 2
      %p106 = por %p104, %p105
      %p107 = scmp.ne.s32.totalorder %s96, %s97
      %p108 = scmp.eq.s32.totalorder %s20, 0
      %p109 = por %p107, %p108
      %p110 = scmp.ne.s32.totalorder %s96, %s97
      %p111 = scmp.eq.s32.totalorder %s21, 2
      %p112 = por %p110, %p111
      %p114 = scmp.ne.s32.totalorder %s97, %s113
      %p115 = scmp.eq.s32.totalorder %s21, 0
      %p116 = por %p114, %p115
      %s117 = ssub.s32 %s22, %s41
      %p118 = scmp.eq.s32.totalorder %s117, 0
      %s120 = sadd.s32 %s119, 1
      %s121 = scalar_select %p118, %s119, %s120
      %p124 = pneg %p118
      %p125 = scmp.eq.s32.totalorder %s15, 2
      %p126 = por %p124, %p125
      %p127 = scmp.ne.s32.totalorder %s119, %s122
      %p128 = scmp.eq.s32.totalorder %s15, 0
      %p129 = por %p127, %p128
      %p130 = scmp.ne.s32.totalorder %s119, %s122
      %p131 = scmp.eq.s32.totalorder %s20, 2
      %p132 = por %p130, %p131
      %p133 = scmp.ne.s32.totalorder %s122, %s123
      %p134 = scmp.eq.s32.totalorder %s20, 0
      %p135 = por %p133, %p134
      %p136 = scmp.ne.s32.totalorder %s122, %s123
      %p137 = scmp.eq.s32.totalorder %s21, 2
      %p138 = por %p136, %p137
      %p140 = scmp.ne.s32.totalorder %s123, %s139
      %p141 = scmp.eq.s32.totalorder %s21, 0
      %p142 = por %p140, %p141
      %s143 = ssub.s32 %s22, %s41
      %s144 = ssub.s32 %s23, %s37
      %s145 = sor.u32 %s143, %s144
      %p146 = scmp.eq.s32.totalorder %s145, 0
      %s148 = sadd.s32 %s147, 1
      %s149 = scalar_select %p146, %s147, %s148
      %p152 = pneg %p146
      %p153 = scmp.eq.s32.totalorder %s15, 2
      %p154 = por %p152, %p153
      %p155 = scmp.ne.s32.totalorder %s147, %s150
      %p156 = scmp.eq.s32.totalorder %s15, 0
      %p157 = por %p155, %p156
      %p158 = scmp.ne.s32.totalorder %s147, %s150
      %p159 = scmp.eq.s32.totalorder %s20, 2
      %p160 = por %p158, %p159
      %p161 = scmp.ne.s32.totalorder %s150, %s151
      %p162 = scmp.eq.s32.totalorder %s20, 0
      %p163 = por %p161, %p162
      %p164 = scmp.ne.s32.totalorder %s150, %s151
      %p165 = scmp.eq.s32.totalorder %s21, 2
      %p166 = por %p164, %p165
      %p168 = scmp.ne.s32.totalorder %s151, %s167
      %p169 = scmp.eq.s32.totalorder %s21, 0
      %p170 = por %p168, %p169
      %p171 = scmp.le.s32.totalorder 1, %s15
      %p172 = scmp.lt.s32.totalorder %s15, 4
      %p173 = pnand %p171, %p172
      %p174 = pneg %p173
      // Predicated region
      $region9: #{tpu_custom_call.1} parent=5 // pred_check
        _
      $region10: #{tpu_custom_call.1} parent=5 // pred_check_branch
        %176 = sbr.rel (%p173) target = $region12
      $region11: #{tpu_custom_call.1} parent=5 // pred_region
        %s177 = ssub.s32 %s15, 1
        // Predicated region
        $region13: #{tpu_custom_call.1} parent=11 // pred_check
          %p178 = pneg %p55
        $region14: #{tpu_custom_call.1} parent=11 // pred_check_branch
          %180 = sbr.rel (%p178) target = $region16
        $region15: #{tpu_custom_call.1} parent=11 // pred_region
          %s182 = ssub.s32 2048, 2048
          %183 = vsyncadd [#allocation6], %s182
          %s184 = sshll.u32 [#allocation5], 4
          %s185 = int_to_ptr.vmem [resolvable:$true] %s184
          %190 = dma.hbm_to_vmem [thread:$0]  %s0, 2048, %s185, [#allocation6], 128, 128, 8
        $region16: #{tpu_custom_call.1} parent=11 // pred_fallthru
          _
        // Predicated region
        $region17: #{tpu_custom_call.1} parent=11 // pred_check
          %p191 = pneg %p83
        $region18: #{tpu_custom_call.1} parent=11 // pred_check_branch
          %193 = sbr.rel (%p191) target = $region20
        $region19: #{tpu_custom_call.1} parent=11 // pred_region
          %s194 = smul.u32 16, %s26
          %s196 = ssub.s32 2048, 2048
          %197 = vsyncadd [#allocation9], %s196
          %s198 = sadd.s32 %s27, %s194
          %s199 = smul.addr %s198, 128
          %s200 = scalar_lea.hbm %s1, %s199
          %s201 = sshll.u32 [#allocation8], 4
          %s202 = int_to_ptr.vmem [resolvable:$true] %s201
          %207 = dma.hbm_to_vmem [thread:$0]  %s200, 2048, %s202, [#allocation9], 128, 128, 8
        $region20: #{tpu_custom_call.1} parent=11 // pred_fallthru
          _
      $region12: #{tpu_custom_call.1} parent=5 // pred_fallthru
        _
      %p208 = scmp.lt.s32.totalorder %s15, 3
      // Predicated region
      $region21: #{tpu_custom_call.1} parent=5 // pred_check
        %p209 = pneg %p208
      $region22: #{tpu_custom_call.1} parent=5 // pred_check_branch
        %211 = sbr.rel (%p209) target = $region24
      $region23: #{tpu_custom_call.1} parent=5 // pred_region
        // Predicated region
        $region25: #{tpu_custom_call.1} parent=23 // pred_check
          %p212 = pneg %p103
        $region26: #{tpu_custom_call.1} parent=23 // pred_check_branch
          %214 = sbr.rel (%p212) target = $region28
        $region27: #{tpu_custom_call.1} parent=23 // pred_region
          %s215 = sand.u32 %s15, 1
          %s216 = scalar_lea.sflag [#allocation6], %s215
          %s217 = sand.u32 %s93, 1
          %s218 = smul.addr %s217, 128
          %s219 = scalar_lea.vmem [#allocation10], %s218
          %s221 = ssub.s32 2048, 2048
          %222 = vsyncadd %s216, %s221
          %s223 = smul.addr %s22, 16
          %s224 = smul.addr %s223, 128
          %s225 = scalar_lea.hbm %s2, %s224
          %s226 = sshll.u32 %s219, 4
          %s227 = int_to_ptr.vmem [resolvable:$true] %s226
          %232 = dma.hbm_to_vmem [thread:$0]  %s225, 2048, %s227, %s216, 128, 128, 8
        $region28: #{tpu_custom_call.1} parent=23 // pred_fallthru
          _
        // Predicated region
        $region29: #{tpu_custom_call.1} parent=23 // pred_check
          %p233 = pneg %p129
        $region30: #{tpu_custom_call.1} parent=23 // pred_check_branch
          %235 = sbr.rel (%p233) target = $region32
        $region31: #{tpu_custom_call.1} parent=23 // pred_region
          %p236 = scmp.lt.s32.totalorder %s22, 2
          %s237 = scalar_select %p236, %s22, 2
          %s238 = scalar_lea.vmem %s3, %s237
        $region32: #{tpu_custom_call.1} parent=23 // pred_fallthru
          _
      $region24: #{tpu_custom_call.1} parent=5 // pred_fallthru
        _
      %p239 = scmp.le.s32.totalorder 1, %s15
      %p240 = scmp.lt.s32.totalorder %s15, 4
      %p241 = pnand %p239, %p240
      %p242 = pneg %p241
      // Predicated region
      $region33: #{tpu_custom_call.1} parent=5 // pred_check
        _
      $region34: #{tpu_custom_call.1} parent=5 // pred_check_branch
        %244 = sbr.rel (%p241) target = $region36
      $region35: #{tpu_custom_call.1} parent=5 // pred_region
        %s245 = ssub.s32 %s15, 1
        // Predicated region
        $region37: #{tpu_custom_call.1} parent=35 // pred_check
          %p246 = pneg %p55
        $region38: #{tpu_custom_call.1} parent=35 // pred_check_branch
          %248 = sbr.rel (%p246) target = $region40
        $region39: #{tpu_custom_call.1} parent=35 // pred_region
          %249 = dma.done [#allocation6], 2048
        $region40: #{tpu_custom_call.1} parent=35 // pred_fallthru
          _
        // Predicated region
        $region41: #{tpu_custom_call.1} parent=35 // pred_check
          %p250 = pneg %p83
        $region42: #{tpu_custom_call.1} parent=35 // pred_check_branch
          %252 = sbr.rel (%p250) target = $region44
        $region43: #{tpu_custom_call.1} parent=35 // pred_region
          %253 = dma.done [#allocation9], 2048
        $region44: #{tpu_custom_call.1} parent=35 // pred_fallthru
          _
        %s254 = sand.u32 %s20, 1
        %s255 = scalar_lea.sflag [#allocation6], %s254
        %s256 = sand.u32 %s96, 1
        %s257 = smul.addr %s256, 128
        %s258 = scalar_lea.vmem [#allocation10], %s257
        // Predicated region
        $region45: #{tpu_custom_call.1} parent=35 // pred_check
          %p259 = pneg %p109
        $region46: #{tpu_custom_call.1} parent=35 // pred_check_branch
          %261 = sbr.rel (%p259) target = $region48
        $region47: #{tpu_custom_call.1} parent=35 // pred_region
          %262 = dma.done %s255, 2048
        $region48: #{tpu_custom_call.1} parent=35 // pred_fallthru
          _
        %p263 = pneg %p55
        %p264 = pneg %p52
        %p265 = pneg %p83
        %p266 = pneg %p80
        %s267 = sand.u32 %s20, 1
        %s268 = scalar_lea.sflag [#allocation6], %s267
        %s269 = sand.u32 %s96, 1
        %s270 = smul.addr %s269, 128
        %s271 = scalar_lea.vmem [#allocation10], %s270
        %p272 = pneg %p109
        %p273 = pneg %p106
        %p274 = scmp.lt.s32.totalorder %s25, 2
        %s275 = scalar_select %p274, %s25, 2
        %s276 = scalar_lea.vmem %s3, %s275
        %p277 = pneg %p135
        %p278 = pneg %p132
        %p279 = pneg %p163
        %p280 = pneg %p160
        %s281 = sand.u32 %s150, 1
        %s282 = scalar_lea.sflag [#allocation7], %s281
        %s283 = sand.u32 %s150, 1
        %s284 = smul.addr %s283, 128
        %s285 = scalar_lea.vmem [#allocation11], %s284
        %s286 = smul.u32 16, %s26
        %p287 = scmp.lt.s32.totalorder %s25, 2
        %s288 = scalar_select %p287, %s25, 2
        %s289 = scalar_lea.vmem %s3, %s288
        %s290 = smul.u32 16, %s26
        %p291 = scmp.eq.s32.totalorder %s25, 0
        %p292 = scmp.eq.s32.totalorder %s26, 0
        %p293 = pnand %p291, %p292
        %p294 = pneg %p293
        %p295 = scmp.eq.s32.totalorder %s27, 0
        %p296 = pnand %p294, %p295
        %p297 = pneg %p296
        // Predicated region
        $region49: #{tpu_custom_call.1} parent=35 // pred_check
          _
        $region50: #{tpu_custom_call.1} parent=35 // pred_check_branch
          %299 = sbr.rel (%p296) target = $region52
        $region51: #{tpu_custom_call.1} parent=35 // pred_region
          %v300 = vld [vmem:[#allocation5] sm:$0xff]
          %v301 = vld [vmem:[#allocation5 + $0x8] sm:$0xff]
          %v302 = vld [vmem:[#allocation5 + $0x10] sm:$0xff]
          %v303 = vld [vmem:[#allocation5 + $0x18] sm:$0xff]
          %v304 = vld [vmem:[#allocation5 + $0x20] sm:$0xff]
          %v305 = vld [vmem:[#allocation5 + $0x28] sm:$0xff]
          %v306 = vld [vmem:[#allocation5 + $0x30] sm:$0xff]
          %v307 = vld [vmem:[#allocation5 + $0x38] sm:$0xff]
          %v308 = vld [vmem:[#allocation5 + $0x40] sm:$0xff]
          %v309 = vld [vmem:[#allocation5 + $0x48] sm:$0xff]
          %v310 = vld [vmem:[#allocation5 + $0x50] sm:$0xff]
          %v311 = vld [vmem:[#allocation5 + $0x58] sm:$0xff]
          %v312 = vld [vmem:[#allocation5 + $0x60] sm:$0xff]
          %v313 = vld [vmem:[#allocation5 + $0x68] sm:$0xff]
          %v314 = vld [vmem:[#allocation5 + $0x70] sm:$0xff]
          %v315 = vld [vmem:[#allocation5 + $0x78] sm:$0xff]
          %316 = vst [vmem:[#allocation2] sm:$0xff] %v300
          %317 = vst [vmem:[#allocation2 + $0x8] sm:$0xff] %v301
          %318 = vst [vmem:[#allocation2 + $0x10] sm:$0xff] %v302
          %319 = vst [vmem:[#allocation2 + $0x18] sm:$0xff] %v303
          %320 = vst [vmem:[#allocation2 + $0x20] sm:$0xff] %v304
          %321 = vst [vmem:[#allocation2 + $0x28] sm:$0xff] %v305
          %322 = vst [vmem:[#allocation2 + $0x30] sm:$0xff] %v306
          %323 = vst [vmem:[#allocation2 + $0x38] sm:$0xff] %v307
          %324 = vst [vmem:[#allocation2 + $0x40] sm:$0xff] %v308
          %325 = vst [vmem:[#allocation2 + $0x48] sm:$0xff] %v309
          %326 = vst [vmem:[#allocation2 + $0x50] sm:$0xff] %v310
          %327 = vst [vmem:[#allocation2 + $0x58] sm:$0xff] %v311
          %328 = vst [vmem:[#allocation2 + $0x60] sm:$0xff] %v312
          %329 = vst [vmem:[#allocation2 + $0x68] sm:$0xff] %v313
          %330 = vst [vmem:[#allocation2 + $0x70] sm:$0xff] %v314
          %331 = vst [vmem:[#allocation2 + $0x78] sm:$0xff] %v315
        $region52: #{tpu_custom_call.1} parent=35 // pred_fallthru
          _
        %p332 = pnand %p292, %p295
        %p333 = pneg %p332
        // Predicated region
        $region53: #{tpu_custom_call.1} parent=35 // pred_check
          _
        $region54: #{tpu_custom_call.1} parent=35 // pred_check_branch
          %335 = sbr.rel (%p332) target = $region56
        $region55: #{tpu_custom_call.1} parent=35 // pred_region
          %v336 = vld [vmem:[#allocation2] sm:$0xff]
          %v337 = vld [vmem:[#allocation2 + $0x8] sm:$0xff]
          %v338 = vld [vmem:[#allocation2 + $0x10] sm:$0xff]
          %v339 = vld [vmem:[#allocation2 + $0x18] sm:$0xff]
          %v340 = vld [vmem:[#allocation2 + $0x20] sm:$0xff]
          %v341 = vld [vmem:[#allocation2 + $0x28] sm:$0xff]
          %v342 = vld [vmem:[#allocation2 + $0x30] sm:$0xff]
          %v343 = vld [vmem:[#allocation2 + $0x38] sm:$0xff]
          %v344 = vld [vmem:[#allocation2 + $0x40] sm:$0xff]
          %v345 = vld [vmem:[#allocation2 + $0x48] sm:$0xff]
          %v346 = vld [vmem:[#allocation2 + $0x50] sm:$0xff]
          %v347 = vld [vmem:[#allocation2 + $0x58] sm:$0xff]
          %v348 = vld [vmem:[#allocation2 + $0x60] sm:$0xff]
          %v349 = vld [vmem:[#allocation2 + $0x68] sm:$0xff]
          %v350 = vld [vmem:[#allocation2 + $0x70] sm:$0xff]
          %v351 = vld [vmem:[#allocation2 + $0x78] sm:$0xff]
          %v352 = vld [vmem:[%s258] sm:$0xff]
          %v353 = vld [vmem:[%s258 + $0x8] sm:$0xff]
          %v354 = vld [vmem:[%s258 + $0x10] sm:$0xff]
          %v355 = vld [vmem:[%s258 + $0x18] sm:$0xff]
          %v356 = vld [vmem:[%s258 + $0x20] sm:$0xff]
          %v357 = vld [vmem:[%s258 + $0x28] sm:$0xff]
          %v358 = vld [vmem:[%s258 + $0x30] sm:$0xff]
          %v359 = vld [vmem:[%s258 + $0x38] sm:$0xff]
          %v360 = vld [vmem:[%s258 + $0x40] sm:$0xff]
          %v361 = vld [vmem:[%s258 + $0x48] sm:$0xff]
          %v362 = vld [vmem:[%s258 + $0x50] sm:$0xff]
          %v363 = vld [vmem:[%s258 + $0x58] sm:$0xff]
          %v364 = vld [vmem:[%s258 + $0x60] sm:$0xff]
          %v365 = vld [vmem:[%s258 + $0x68] sm:$0xff]
          %v366 = vld [vmem:[%s258 + $0x70] sm:$0xff]
          %v367 = vld [vmem:[%s258 + $0x78] sm:$0xff]
          %368 = vmatprep.subr.mxu0 0.0
          %369 = vmatpush1.msra.mxu0 %v352
          %370 = vmatprep.subr.mxu0 0.0
          %371 = vmatpush1.msra.mxu0 %v353
          %372 = vmatprep.subr.mxu0 0.0
          %373 = vmatpush1.msra.mxu0 %v354
          %374 = vmatprep.subr.mxu0 0.0
          %375 = vmatpush1.msra.mxu0 %v355
          %376 = vmatprep.subr.mxu0 0.0
          %377 = vmatpush1.msra.mxu0 %v356
          %378 = vmatprep.subr.mxu0 0.0
          %379 = vmatpush1.msra.mxu0 %v357
          %380 = vmatprep.subr.mxu0 0.0
          %381 = vmatpush1.msra.mxu0 %v358
          %382 = vmatprep.subr.mxu0 0.0
          %383 = vmatpush1.msra.mxu0 %v359
          %384 = vmatprep.subr.mxu0 0.0
          %385 = vmatpush1.msra.mxu0 %v360
          %386 = vmatprep.subr.mxu0 0.0
          %387 = vmatpush1.msra.mxu0 %v361
          %388 = vmatprep.subr.mxu0 0.0
          %389 = vmatpush1.msra.mxu0 %v362
          %390 = vmatprep.subr.mxu0 0.0
          %391 = vmatpush1.msra.mxu0 %v363
          %392 = vmatprep.subr.mxu0 0.0
          %393 = vmatpush1.msra.mxu0 %v364
          %394 = vmatprep.subr.mxu0 0.0
          %395 = vmatpush1.msra.mxu0 %v365
          %396 = vmatprep.subr.mxu0 0.0
          %397 = vmatpush1.msra.mxu0 %v366
          %398 = vmatprep.subr.mxu0 0.0
          %399 = vmatpush1.msra.mxu0 %v367
          %400 = vmatprep.subr.mxu0 0.0
          %401 = vmatpush1.msra.mxu0 0.0
          %402 = vmatprep.subr.mxu0 0.0
          %403 = vmatpush1.msra.mxu0 0.0
          %404 = vmatprep.subr.mxu0 0.0
          %405 = vmatpush1.msra.mxu0 0.0
          %406 = vmatprep.subr.mxu0 0.0
          %407 = vmatpush1.msra.mxu0 0.0
          %408 = vmatprep.subr.mxu0 0.0
          %409 = vmatpush1.msra.mxu0 0.0
          %410 = vmatprep.subr.mxu0 0.0
          %411 = vmatpush1.msra.mxu0 0.0
          %412 = vmatprep.subr.mxu0 0.0
          %413 = vmatpush1.msra.mxu0 0.0
          %414 = vmatprep.subr.mxu0 0.0
          %415 = vmatpush1.msra.mxu0 0.0
          %416 = vmatprep.subr.mxu0 0.0
          %417 = vmatpush1.msra.mxu0 0.0
          %418 = vmatprep.subr.mxu0 0.0
          %419 = vmatpush1.msra.mxu0 0.0
          %420 = vmatprep.subr.mxu0 0.0
          %421 = vmatpush1.msra.mxu0 0.0
          %422 = vmatprep.subr.mxu0 0.0
          %423 = vmatpush1.msra.mxu0 0.0
          %424 = vmatprep.subr.mxu0 0.0
          %425 = vmatpush1.msra.mxu0 0.0
          %426 = vmatprep.subr.mxu0 0.0
          %427 = vmatpush1.msra.mxu0 0.0
          %428 = vmatprep.subr.mxu0 0.0
          %429 = vmatpush1.msra.mxu0 0.0
          %430 = vmatprep.subr.mxu0 0.0
          %431 = vmatpush1.msra.mxu0 0.0
          %432 = vmatprep.mubr.f32.mxu0 0.0
          %433 = vmatmul.mubr.f32.gmra.mrb[0].mxu0 %v336
          %v434 = vpop.f32.mrb[0].mxu0
          %v435 = vadd.f32 0.0, %v434
          %v436 = vpop.f32.mrb[0].mxu0
          %437 = vmatprep.mubr.f32.mxu0 0.0
          %438 = vmatmul.mubr.f32.gmra.mrb[0].mxu0 %v337
          %v439 = vpop.f32.mrb[0].mxu0
          %v440 = vadd.f32 0.0, %v439
          %v441 = vpop.f32.mrb[0].mxu0
          %442 = vmatprep.mubr.f32.mxu0 0.0
          %443 = vmatmul.mubr.f32.gmra.mrb[0].mxu0 %v338
          %v444 = vpop.f32.mrb[0].mxu0
          %v445 = vadd.f32 0.0, %v444
          %v446 = vpop.f32.mrb[0].mxu0
          %447 = vmatprep.mubr.f32.mxu0 0.0
          %448 = vmatmul.mubr.f32.gmra.mrb[0].mxu0 %v339
          %v449 = vpop.f32.mrb[0].mxu0
          %v450 = vadd.f32 0.0, %v449
          %v451 = vpop.f32.mrb[0].mxu0
          %452 = vmatprep.mubr.f32.mxu0 0.0
          %453 = vmatmul.mubr.f32.gmra.mrb[0].mxu0 %v340
          %v454 = vpop.f32.mrb[0].mxu0
          %v455 = vadd.f32 0.0, %v454
          %v456 = vpop.f32.mrb[0].mxu0
          %457 = vmatprep.mubr.f32.mxu0 0.0
          %458 = vmatmul.mubr.f32.gmra.mrb[0].mxu0 %v341
          %v459 = vpop.f32.mrb[0].mxu0
          %v460 = vadd.f32 0.0, %v459
          %v461 = vpop.f32.mrb[0].mxu0
          %462 = vmatprep.mubr.f32.mxu0 0.0
          %463 = vmatmul.mubr.f32.gmra.mrb[0].mxu0 %v342
          %v464 = vpop.f32.mrb[0].mxu0
          %v465 = vadd.f32 0.0, %v464
          %v466 = vpop.f32.mrb[0].mxu0
          %467 = vmatprep.mubr.f32.mxu0 0.0
          %468 = vmatmul.mubr.f32.gmra.mrb[0].mxu0 %v343
          %v469 = vpop.f32.mrb[0].mxu0
          %v470 = vadd.f32 0.0, %v469
          %v471 = vpop.f32.mrb[0].mxu0
          %472 = vmatprep.mubr.f32.mxu0 0.0
          %473 = vmatmul.mubr.f32.gmra.mrb[0].mxu0 %v344
          %v474 = vpop.f32.mrb[0].mxu0
          %v475 = vadd.f32 0.0, %v474
          %v476 = vpop.f32.mrb[0].mxu0
          %477 = vmatprep.mubr.f32.mxu0 0.0
          %478 = vmatmul.mubr.f32.gmra.mrb[0].mxu0 %v345
          %v479 = vpop.f32.mrb[0].mxu0
          %v480 = vadd.f32 0.0, %v479
          %v481 = vpop.f32.mrb[0].mxu0
          %482 = vmatprep.mubr.f32.mxu0 0.0
          %483 = vmatmul.mubr.f32.gmra.mrb[0].mxu0 %v346
          %v484 = vpop.f32.mrb[0].mxu0
          %v485 = vadd.f32 0.0, %v484
          %v486 = vpop.f32.mrb[0].mxu0
          %487 = vmatprep.mubr.f32.mxu0 0.0
          %488 = vmatmul.mubr.f32.gmra.mrb[0].mxu0 %v347
          %v489 = vpop.f32.mrb[0].mxu0
          %v490 = vadd.f32 0.0, %v489
          %v491 = vpop.f32.mrb[0].mxu0
          %492 = vmatprep.mubr.f32.mxu0 0.0
          %493 = vmatmul.mubr.f32.gmra.mrb[0].mxu0 %v348
          %v494 = vpop.f32.mrb[0].mxu0
          %v495 = vadd.f32 0.0, %v494
          %v496 = vpop.f32.mrb[0].mxu0
          %497 = vmatprep.mubr.f32.mxu0 0.0
          %498 = vmatmul.mubr.f32.gmra.mrb[0].mxu0 %v349
          %v499 = vpop.f32.mrb[0].mxu0
          %v500 = vadd.f32 0.0, %v499
          %v501 = vpop.f32.mrb[0].mxu0
          %502 = vmatprep.mubr.f32.mxu0 0.0
          %503 = vmatmul.mubr.f32.gmra.mrb[0].mxu0 %v350
          %v504 = vpop.f32.mrb[0].mxu0
          %v505 = vadd.f32 0.0, %v504
          %v506 = vpop.f32.mrb[0].mxu0
          %507 = vmatprep.mubr.f32.mxu0 0.0
          %508 = vmatmul.mubr.f32.gmra.mrb[0].mxu0 %v351
          %v509 = vpop.f32.mrb[0].mxu0
          %v510 = vadd.f32 0.0, %v509
          %v511 = vpop.f32.mrb[0].mxu0
          %512 = vdwg.mxu0
          %513 = vst [vmem:[#allocation3] sm:$0xff] %v435
          %514 = vst [vmem:[#allocation3 + $0x8] sm:$0xff] %v440
          %515 = vst [vmem:[#allocation3 + $0x10] sm:$0xff] %v445
          %516 = vst [vmem:[#allocation3 + $0x18] sm:$0xff] %v450
          %517 = vst [vmem:[#allocation3 + $0x20] sm:$0xff] %v455
          %518 = vst [vmem:[#allocation3 + $0x28] sm:$0xff] %v460
          %519 = vst [vmem:[#allocation3 + $0x30] sm:$0xff] %v465
          %520 = vst [vmem:[#allocation3 + $0x38] sm:$0xff] %v470
          %521 = vst [vmem:[#allocation3 + $0x40] sm:$0xff] %v475
          %522 = vst [vmem:[#allocation3 + $0x48] sm:$0xff] %v480
          %523 = vst [vmem:[#allocation3 + $0x50] sm:$0xff] %v485
          %524 = vst [vmem:[#allocation3 + $0x58] sm:$0xff] %v490
          %525 = vst [vmem:[#allocation3 + $0x60] sm:$0xff] %v495
          %526 = vst [vmem:[#allocation3 + $0x68] sm:$0xff] %v500
          %527 = vst [vmem:[#allocation3 + $0x70] sm:$0xff] %v505
          %528 = vst [vmem:[#allocation3 + $0x78] sm:$0xff] %v510
        $region56: #{tpu_custom_call.1} parent=35 // pred_fallthru
          _
        // Predicated region
        $region57: #{tpu_custom_call.1} parent=35 // pred_check
          %p529 = pneg %p295
        $region58: #{tpu_custom_call.1} parent=35 // pred_check_branch
          %531 = sbr.rel (%p529) target = $region60
        $region59: #{tpu_custom_call.1} parent=35 // pred_region
          %532 = vst [vmem:[#allocation4] sm:$0xff] 0.0
          %533 = vst [vmem:[#allocation4 + $0x8] sm:$0xff] 0.0
          %534 = vst [vmem:[#allocation4 + $0x10] sm:$0xff] 0.0
          %535 = vst [vmem:[#allocation4 + $0x18] sm:$0xff] 0.0
          %536 = vst [vmem:[#allocation4 + $0x20] sm:$0xff] 0.0
          %537 = vst [vmem:[#allocation4 + $0x28] sm:$0xff] 0.0
          %538 = vst [vmem:[#allocation4 + $0x30] sm:$0xff] 0.0
          %539 = vst [vmem:[#allocation4 + $0x38] sm:$0xff] 0.0
          %540 = vst [vmem:[#allocation4 + $0x40] sm:$0xff] 0.0
          %541 = vst [vmem:[#allocation4 + $0x48] sm:$0xff] 0.0
          %542 = vst [vmem:[#allocation4 + $0x50] sm:$0xff] 0.0
          %543 = vst [vmem:[#allocation4 + $0x58] sm:$0xff] 0.0
          %544 = vst [vmem:[#allocation4 + $0x60] sm:$0xff] 0.0
          %545 = vst [vmem:[#allocation4 + $0x68] sm:$0xff] 0.0
          %546 = vst [vmem:[#allocation4 + $0x70] sm:$0xff] 0.0
          %547 = vst [vmem:[#allocation4 + $0x78] sm:$0xff] 0.0
        $region60: #{tpu_custom_call.1} parent=35 // pred_fallthru
          _
        %s548 = smul.u32 %s27, 128
        %v549 = vld [vmem:[#allocation4] sm:$0xff]
        %v550 = vld [vmem:[#allocation4 + $0x8] sm:$0xff]
        %v551 = vld [vmem:[#allocation4 + $0x10] sm:$0xff]
        %v552 = vld [vmem:[#allocation4 + $0x18] sm:$0xff]
        %v553 = vld [vmem:[#allocation4 + $0x20] sm:$0xff]
        %v554 = vld [vmem:[#allocation4 + $0x28] sm:$0xff]
        %v555 = vld [vmem:[#allocation4 + $0x30] sm:$0xff]
        %v556 = vld [vmem:[#allocation4 + $0x38] sm:$0xff]
        %v557 = vld [vmem:[#allocation4 + $0x40] sm:$0xff]
        %v558 = vld [vmem:[#allocation4 + $0x48] sm:$0xff]
        %v559 = vld [vmem:[#allocation4 + $0x50] sm:$0xff]
        %v560 = vld [vmem:[#allocation4 + $0x58] sm:$0xff]
        %v561 = vld [vmem:[#allocation4 + $0x60] sm:$0xff]
        %v562 = vld [vmem:[#allocation4 + $0x68] sm:$0xff]
        %v563 = vld [vmem:[#allocation4 + $0x70] sm:$0xff]
        %v564 = vld [vmem:[#allocation4 + $0x78] sm:$0xff]
        %v565 = vld [vmem:[#allocation8] sm:$0xff]
        %v566 = vld [vmem:[#allocation8 + $0x8] sm:$0xff]
        %v567 = vld [vmem:[#allocation8 + $0x10] sm:$0xff]
        %v568 = vld [vmem:[#allocation8 + $0x18] sm:$0xff]
        %v569 = vld [vmem:[#allocation8 + $0x20] sm:$0xff]
        %v570 = vld [vmem:[#allocation8 + $0x28] sm:$0xff]
        %v571 = vld [vmem:[#allocation8 + $0x30] sm:$0xff]
        %v572 = vld [vmem:[#allocation8 + $0x38] sm:$0xff]
        %v573 = vld [vmem:[#allocation8 + $0x40] sm:$0xff]
        %v574 = vld [vmem:[#allocation8 + $0x48] sm:$0xff]
        %v575 = vld [vmem:[#allocation8 + $0x50] sm:$0xff]
        %v576 = vld [vmem:[#allocation8 + $0x58] sm:$0xff]
        %v577 = vld [vmem:[#allocation8 + $0x60] sm:$0xff]
        %v578 = vld [vmem:[#allocation8 + $0x68] sm:$0xff]
        %v579 = vld [vmem:[#allocation8 + $0x70] sm:$0xff]
        %v580 = vld [vmem:[#allocation8 + $0x78] sm:$0xff]
        %s581 = scalar_lea.vmem [#allocation3], %s548
        %v582 = vld [vmem:[%s581] sm:$0xff]
        %v583 = vld [vmem:[%s581 + $0x8] sm:$0xff]
        %v584 = vld [vmem:[%s581 + $0x10] sm:$0xff]
        %v585 = vld [vmem:[%s581 + $0x18] sm:$0xff]
        %v586 = vld [vmem:[%s581 + $0x20] sm:$0xff]
        %v587 = vld [vmem:[%s581 + $0x28] sm:$0xff]
        %v588 = vld [vmem:[%s581 + $0x30] sm:$0xff]
        %v589 = vld [vmem:[%s581 + $0x38] sm:$0xff]
        %v590 = vld [vmem:[%s581 + $0x40] sm:$0xff]
        %v591 = vld [vmem:[%s581 + $0x48] sm:$0xff]
        %v592 = vld [vmem:[%s581 + $0x50] sm:$0xff]
        %v593 = vld [vmem:[%s581 + $0x58] sm:$0xff]
        %v594 = vld [vmem:[%s581 + $0x60] sm:$0xff]
        %v595 = vld [vmem:[%s581 + $0x68] sm:$0xff]
        %v596 = vld [vmem:[%s581 + $0x70] sm:$0xff]
        %v597 = vld [vmem:[%s581 + $0x78] sm:$0xff]
        %598 = vmatprep.subr.mxu0 0.0
        %599 = vmatpush1.msra.mxu0 %v582
        %600 = vmatprep.subr.mxu0 0.0
        %601 = vmatpush1.msra.mxu0 %v583
        %602 = vmatprep.subr.mxu0 0.0
        %603 = vmatpush1.msra.mxu0 %v584
        %604 = vmatprep.subr.mxu0 0.0
        %605 = vmatpush1.msra.mxu0 %v585
        %606 = vmatprep.subr.mxu0 0.0
        %607 = vmatpush1.msra.mxu0 %v586
        %608 = vmatprep.subr.mxu0 0.0
        %609 = vmatpush1.msra.mxu0 %v587
        %610 = vmatprep.subr.mxu0 0.0
        %611 = vmatpush1.msra.mxu0 %v588
        %612 = vmatprep.subr.mxu0 0.0
        %613 = vmatpush1.msra.mxu0 %v589
        %614 = vmatprep.subr.mxu0 0.0
        %615 = vmatpush1.msra.mxu0 %v590
        %616 = vmatprep.subr.mxu0 0.0
        %617 = vmatpush1.msra.mxu0 %v591
        %618 = vmatprep.subr.mxu0 0.0
        %619 = vmatpush1.msra.mxu0 %v592
        %620 = vmatprep.subr.mxu0 0.0
        %621 = vmatpush1.msra.mxu0 %v593
        %622 = vmatprep.subr.mxu0 0.0
        %623 = vmatpush1.msra.mxu0 %v594
        %624 = vmatprep.subr.mxu0 0.0
        %625 = vmatpush1.msra.mxu0 %v595
        %626 = vmatprep.subr.mxu0 0.0
        %627 = vmatpush1.msra.mxu0 %v596
        %628 = vmatprep.subr.mxu0 0.0
        %629 = vmatpush1.msra.mxu0 %v597
        %630 = vmatprep.subr.mxu0 0.0
        %631 = vmatpush1.msra.mxu0 0.0
        %632 = vmatprep.subr.mxu0 0.0
        %633 = vmatpush1.msra.mxu0 0.0
        %634 = vmatprep.subr.mxu0 0.0
        %635 = vmatpush1.msra.mxu0 0.0
        %636 = vmatprep.subr.mxu0 0.0
        %637 = vmatpush1.msra.mxu0 0.0
        %638 = vmatprep.subr.mxu0 0.0
        %639 = vmatpush1.msra.mxu0 0.0
        %640 = vmatprep.subr.mxu0 0.0
        %641 = vmatpush1.msra.mxu0 0.0
        %642 = vmatprep.subr.mxu0 0.0
        %643 = vmatpush1.msra.mxu0 0.0
        %644 = vmatprep.subr.mxu0 0.0
        %645 = vmatpush1.msra.mxu0 0.0
        %646 = vmatprep.subr.mxu0 0.0
        %647 = vmatpush1.msra.mxu0 0.0
        %648 = vmatprep.subr.mxu0 0.0
        %649 = vmatpush1.msra.mxu0 0.0
        %650 = vmatprep.subr.mxu0 0.0
        %651 = vmatpush1.msra.mxu0 0.0
        %652 = vmatprep.subr.mxu0 0.0
        %653 = vmatpush1.msra.mxu0 0.0
        %654 = vmatprep.subr.mxu0 0.0
        %655 = vmatpush1.msra.mxu0 0.0
        %656 = vmatprep.subr.mxu0 0.0
        %657 = vmatpush1.msra.mxu0 0.0
        %658 = vmatprep.subr.mxu0 0.0
        %659 = vmatpush1.msra.mxu0 0.0
        %660 = vmatprep.subr.mxu0 0.0
        %661 = vmatpush1.msra.mxu0 0.0
        %662 = vmatprep.mubr.f32.mxu0 0.0
        %663 = vmatmul.mubr.f32.gmra.mrb[0].mxu0 %v565
        %v664 = vpop.f32.mrb[0].mxu0
        %v665 = vadd.f32 0.0, %v664
        %v666 = vpop.f32.mrb[0].mxu0
        %667 = vmatprep.mubr.f32.mxu0 0.0
        %668 = vmatmul.mubr.f32.gmra.mrb[0].mxu0 %v566
        %v669 = vpop.f32.mrb[0].mxu0
        %v670 = vadd.f32 0.0, %v669
        %v671 = vpop.f32.mrb[0].mxu0
        %672 = vmatprep.mubr.f32.mxu0 0.0
        %673 = vmatmul.mubr.f32.gmra.mrb[0].mxu0 %v567
        %v674 = vpop.f32.mrb[0].mxu0
        %v675 = vadd.f32 0.0, %v674
        %v676 = vpop.f32.mrb[0].mxu0
        %677 = vmatprep.mubr.f32.mxu0 0.0
        %678 = vmatmul.mubr.f32.gmra.mrb[0].mxu0 %v568
        %v679 = vpop.f32.mrb[0].mxu0
        %v680 = vadd.f32 0.0, %v679
        %v681 = vpop.f32.mrb[0].mxu0
        %682 = vmatprep.mubr.f32.mxu0 0.0
        %683 = vmatmul.mubr.f32.gmra.mrb[0].mxu0 %v569
        %v684 = vpop.f32.mrb[0].mxu0
        %v685 = vadd.f32 0.0, %v684
        %v686 = vpop.f32.mrb[0].mxu0
        %687 = vmatprep.mubr.f32.mxu0 0.0
        %688 = vmatmul.mubr.f32.gmra.mrb[0].mxu0 %v570
        %v689 = vpop.f32.mrb[0].mxu0
        %v690 = vadd.f32 0.0, %v689
        %v691 = vpop.f32.mrb[0].mxu0
        %692 = vmatprep.mubr.f32.mxu0 0.0
        %693 = vmatmul.mubr.f32.gmra.mrb[0].mxu0 %v571
        %v694 = vpop.f32.mrb[0].mxu0
        %v695 = vadd.f32 0.0, %v694
        %v696 = vpop.f32.mrb[0].mxu0
        %697 = vmatprep.mubr.f32.mxu0 0.0
        %698 = vmatmul.mubr.f32.gmra.mrb[0].mxu0 %v572
        %v699 = vpop.f32.mrb[0].mxu0
        %v700 = vadd.f32 0.0, %v699
        %v701 = vpop.f32.mrb[0].mxu0
        %702 = vmatprep.mubr.f32.mxu0 0.0
        %703 = vmatmul.mubr.f32.gmra.mrb[0].mxu0 %v573
        %v704 = vpop.f32.mrb[0].mxu0
        %v705 = vadd.f32 0.0, %v704
        %v706 = vpop.f32.mrb[0].mxu0
        %707 = vmatprep.mubr.f32.mxu0 0.0
        %708 = vmatmul.mubr.f32.gmra.mrb[0].mxu0 %v574
        %v709 = vpop.f32.mrb[0].mxu0
        %v710 = vadd.f32 0.0, %v709
        %v711 = vpop.f32.mrb[0].mxu0
        %712 = vmatprep.mubr.f32.mxu0 0.0
        %713 = vmatmul.mubr.f32.gmra.mrb[0].mxu0 %v575
        %v714 = vpop.f32.mrb[0].mxu0
        %v715 = vadd.f32 0.0, %v714
        %v716 = vpop.f32.mrb[0].mxu0
        %717 = vmatprep.mubr.f32.mxu0 0.0
        %718 = vmatmul.mubr.f32.gmra.mrb[0].mxu0 %v576
        %v719 = vpop.f32.mrb[0].mxu0
        %v720 = vadd.f32 0.0, %v719
        %v721 = vpop.f32.mrb[0].mxu0
        %722 = vmatprep.mubr.f32.mxu0 0.0
        %723 = vmatmul.mubr.f32.gmra.mrb[0].mxu0 %v577
        %v724 = vpop.f32.mrb[0].mxu0
        %v725 = vadd.f32 0.0, %v724
        %v726 = vpop.f32.mrb[0].mxu0
        %727 = vmatprep.mubr.f32.mxu0 0.0
        %728 = vmatmul.mubr.f32.gmra.mrb[0].mxu0 %v578
        %v729 = vpop.f32.mrb[0].mxu0
        %v730 = vadd.f32 0.0, %v729
        %v731 = vpop.f32.mrb[0].mxu0
        %732 = vmatprep.mubr.f32.mxu0 0.0
        %733 = vmatmul.mubr.f32.gmra.mrb[0].mxu0 %v579
        %v734 = vpop.f32.mrb[0].mxu0
        %v735 = vadd.f32 0.0, %v734
        %v736 = vpop.f32.mrb[0].mxu0
        %737 = vmatprep.mubr.f32.mxu0 0.0
        %738 = vmatmul.mubr.f32.gmra.mrb[0].mxu0 %v580
        %v739 = vpop.f32.mrb[0].mxu0
        %v740 = vadd.f32 0.0, %v739
        %v741 = vpop.f32.mrb[0].mxu0
        %742 = vdwg.mxu0
        %v743 = vadd.f32 %v549, %v665
        %v744 = vadd.f32 %v550, %v670
        %v745 = vadd.f32 %v551, %v675
        %v746 = vadd.f32 %v552, %v680
        %v747 = vadd.f32 %v553, %v685
        %v748 = vadd.f32 %v554, %v690
        %v749 = vadd.f32 %v555, %v695
        %v750 = vadd.f32 %v556, %v700
        %v751 = vadd.f32 %v557, %v705
        %v752 = vadd.f32 %v558, %v710
        %v753 = vadd.f32 %v559, %v715
        %v754 = vadd.f32 %v560, %v720
        %v755 = vadd.f32 %v561, %v725
        %v756 = vadd.f32 %v562, %v730
        %v757 = vadd.f32 %v563, %v735
        %v758 = vadd.f32 %v564, %v740
        %759 = vst [vmem:[#allocation4] sm:$0xff] %v743
        %760 = vst [vmem:[#allocation4 + $0x8] sm:$0xff] %v744
        %761 = vst [vmem:[#allocation4 + $0x10] sm:$0xff] %v745
        %762 = vst [vmem:[#allocation4 + $0x18] sm:$0xff] %v746
        %763 = vst [vmem:[#allocation4 + $0x20] sm:$0xff] %v747
        %764 = vst [vmem:[#allocation4 + $0x28] sm:$0xff] %v748
        %765 = vst [vmem:[#allocation4 + $0x30] sm:$0xff] %v749
        %766 = vst [vmem:[#allocation4 + $0x38] sm:$0xff] %v750
        %767 = vst [vmem:[#allocation4 + $0x40] sm:$0xff] %v751
        %768 = vst [vmem:[#allocation4 + $0x48] sm:$0xff] %v752
        %769 = vst [vmem:[#allocation4 + $0x50] sm:$0xff] %v753
        %770 = vst [vmem:[#allocation4 + $0x58] sm:$0xff] %v754
        %771 = vst [vmem:[#allocation4 + $0x60] sm:$0xff] %v755
        %772 = vst [vmem:[#allocation4 + $0x68] sm:$0xff] %v756
        %773 = vst [vmem:[#allocation4 + $0x70] sm:$0xff] %v757
        %774 = vst [vmem:[#allocation4 + $0x78] sm:$0xff] %v758
        // Predicated region
        $region61: #{tpu_custom_call.1} parent=35 // pred_check
          %p775 = pneg %p295
        $region62: #{tpu_custom_call.1} parent=35 // pred_check_branch
          %777 = sbr.rel (%p775) target = $region64
        $region63: #{tpu_custom_call.1} parent=35 // pred_region
          %v778 = vld [vmem:[#allocation4] sm:$0xff]
          %v779 = vld [vmem:[#allocation4 + $0x8] sm:$0xff]
          %v780 = vld [vmem:[#allocation4 + $0x10] sm:$0xff]
          %v781 = vld [vmem:[#allocation4 + $0x18] sm:$0xff]
          %v782 = vld [vmem:[#allocation4 + $0x20] sm:$0xff]
          %v783 = vld [vmem:[#allocation4 + $0x28] sm:$0xff]
          %v784 = vld [vmem:[#allocation4 + $0x30] sm:$0xff]
          %v785 = vld [vmem:[#allocation4 + $0x38] sm:$0xff]
          %v786 = vld [vmem:[#allocation4 + $0x40] sm:$0xff]
          %v787 = vld [vmem:[#allocation4 + $0x48] sm:$0xff]
          %v788 = vld [vmem:[#allocation4 + $0x50] sm:$0xff]
          %v789 = vld [vmem:[#allocation4 + $0x58] sm:$0xff]
          %v790 = vld [vmem:[#allocation4 + $0x60] sm:$0xff]
          %v791 = vld [vmem:[#allocation4 + $0x68] sm:$0xff]
          %v792 = vld [vmem:[#allocation4 + $0x70] sm:$0xff]
          %v793 = vld [vmem:[#allocation4 + $0x78] sm:$0xff]
          %v794 = vld [vmem:[%s289] sm:$0x1]
          %v796 = vlaneseq
          %v797 = vshrl.u32 %v796, 7
          %v798 = vsub.s32 0, %v797
          %v799 = vrot.slane %v794, %v798
          %v801 = vadd.f32 %v778, %v799
          %v802 = vadd.f32 %v779, %v799
          %v803 = vadd.f32 %v780, %v799
          %v804 = vadd.f32 %v781, %v799
          %v805 = vadd.f32 %v782, %v799
          %v806 = vadd.f32 %v783, %v799
          %v807 = vadd.f32 %v784, %v799
          %v808 = vadd.f32 %v785, %v799
          %v809 = vadd.f32 %v786, %v799
          %v810 = vadd.f32 %v787, %v799
          %v811 = vadd.f32 %v788, %v799
          %v812 = vadd.f32 %v789, %v799
          %v813 = vadd.f32 %v790, %v799
          %v814 = vadd.f32 %v791, %v799
          %v815 = vadd.f32 %v792, %v799
          %v816 = vadd.f32 %v793, %v799
          %v817 = vmax.f32 %v801, 0.0
          %v818 = vmax.f32 %v802, 0.0
          %v819 = vmax.f32 %v803, 0.0
          %v820 = vmax.f32 %v804, 0.0
          %v821 = vmax.f32 %v805, 0.0
          %v822 = vmax.f32 %v806, 0.0
          %v823 = vmax.f32 %v807, 0.0
          %v824 = vmax.f32 %v808, 0.0
          %v825 = vmax.f32 %v809, 0.0
          %v826 = vmax.f32 %v810, 0.0
          %v827 = vmax.f32 %v811, 0.0
          %v828 = vmax.f32 %v812, 0.0
          %v829 = vmax.f32 %v813, 0.0
          %v830 = vmax.f32 %v814, 0.0
          %v831 = vmax.f32 %v815, 0.0
          %v832 = vmax.f32 %v816, 0.0
          %s833 = smul.u32 %s26, 128
          %s834 = scalar_lea.vmem [#allocation2], %s833
          %835 = vst [vmem:[%s834] sm:$0xff] %v817
          %836 = vst [vmem:[%s834 + $0x8] sm:$0xff] %v818
          %837 = vst [vmem:[%s834 + $0x10] sm:$0xff] %v819
          %838 = vst [vmem:[%s834 + $0x18] sm:$0xff] %v820
          %839 = vst [vmem:[%s834 + $0x20] sm:$0xff] %v821
          %840 = vst [vmem:[%s834 + $0x28] sm:$0xff] %v822
          %841 = vst [vmem:[%s834 + $0x30] sm:$0xff] %v823
          %842 = vst [vmem:[%s834 + $0x38] sm:$0xff] %v824
          %843 = vst [vmem:[%s834 + $0x40] sm:$0xff] %v825
          %844 = vst [vmem:[%s834 + $0x48] sm:$0xff] %v826
          %845 = vst [vmem:[%s834 + $0x50] sm:$0xff] %v827
          %846 = vst [vmem:[%s834 + $0x58] sm:$0xff] %v828
          %847 = vst [vmem:[%s834 + $0x60] sm:$0xff] %v829
          %848 = vst [vmem:[%s834 + $0x68] sm:$0xff] %v830
          %849 = vst [vmem:[%s834 + $0x70] sm:$0xff] %v831
          %850 = vst [vmem:[%s834 + $0x78] sm:$0xff] %v832
          %851 = vst [vmem:[%s285] sm:$0xff] %v817
          %852 = vst [vmem:[%s285 + $0x8] sm:$0xff] %v818
          %853 = vst [vmem:[%s285 + $0x10] sm:$0xff] %v819
          %854 = vst [vmem:[%s285 + $0x18] sm:$0xff] %v820
          %855 = vst [vmem:[%s285 + $0x20] sm:$0xff] %v821
          %856 = vst [vmem:[%s285 + $0x28] sm:$0xff] %v822
          %857 = vst [vmem:[%s285 + $0x30] sm:$0xff] %v823
          %858 = vst [vmem:[%s285 + $0x38] sm:$0xff] %v824
          %859 = vst [vmem:[%s285 + $0x40] sm:$0xff] %v825
          %860 = vst [vmem:[%s285 + $0x48] sm:$0xff] %v826
          %861 = vst [vmem:[%s285 + $0x50] sm:$0xff] %v827
          %862 = vst [vmem:[%s285 + $0x58] sm:$0xff] %v828
          %863 = vst [vmem:[%s285 + $0x60] sm:$0xff] %v829
          %864 = vst [vmem:[%s285 + $0x68] sm:$0xff] %v830
          %865 = vst [vmem:[%s285 + $0x70] sm:$0xff] %v831
          %866 = vst [vmem:[%s285 + $0x78] sm:$0xff] %v832
        $region64: #{tpu_custom_call.1} parent=35 // pred_fallthru
          _
        %s867 = sand.u32 %s150, 1
        %s868 = scalar_lea.sflag [#allocation7], %s867
        %s869 = sand.u32 %s150, 1
        %s870 = smul.addr %s869, 128
        %s871 = scalar_lea.vmem [#allocation11], %s870
        // Predicated region
        $region65: #{tpu_custom_call.1} parent=35 // pred_check
          %p872 = pneg %p160
        $region66: #{tpu_custom_call.1} parent=35 // pred_check_branch
          %874 = sbr.rel (%p872) target = $region68
        $region67: #{tpu_custom_call.1} parent=35 // pred_region
          %s875 = smul.u32 16, %s26
          %s877 = ssub.s32 2048, 2048
          %878 = vsyncadd %s868, %s877
          %s879 = smul.addr %s25, 16
          %s880 = sadd.s32 %s875, %s879
          %s881 = smul.addr %s880, 128
          %s882 = scalar_lea.hbm %s4, %s881
          %s883 = sshll.u32 %s871, 4
          %s884 = int_to_ptr.vmem [resolvable:$true] %s883
          %889 = dma.vmem_to_hbm [thread:$0]  %s884, 2048, %s882, %s868, 128, 128, 8
        $region68: #{tpu_custom_call.1} parent=35 // pred_fallthru
          _
      $region36: #{tpu_custom_call.1} parent=5 // pred_fallthru
        _
      %p890 = scmp.le.s32.totalorder 2, %s15
      // Predicated region
      $region69: #{tpu_custom_call.1} parent=5 // pred_check
        %p891 = pneg %p890
      $region70: #{tpu_custom_call.1} parent=5 // pred_check_branch
        %893 = sbr.rel (%p891) target = $region72
      $region71: #{tpu_custom_call.1} parent=5 // pred_region
        %s894 = ssub.s32 %s15, 2
        // Predicated region
        $region73: #{tpu_custom_call.1} parent=71 // pred_check
          %p895 = pneg %p166
        $region74: #{tpu_custom_call.1} parent=71 // pred_check_branch
          %897 = sbr.rel (%p895) target = $region76
        $region75: #{tpu_custom_call.1} parent=71 // pred_region
          %s898 = sand.u32 %s151, 1
          %s899 = scalar_lea.sflag [#allocation7], %s898
          %s900 = sand.u32 %s151, 1
          %s901 = smul.addr %s900, 128
          %s902 = scalar_lea.vmem [#allocation11], %s901
          %903 = dma.done %s899, 2048
        $region76: #{tpu_custom_call.1} parent=71 // pred_fallthru
          _
      $region72: #{tpu_custom_call.1} parent=5 // pred_fallthru
        _
    $region6: #{tpu_custom_call.1} parent=1 // loop_footer
      %s19 = sadd.s32 1, %s15
    $region7: #{tpu_custom_call.1} parent=1 // loop_footer_branch
      %14 = sbr.rel target = $region3
    $region8: #{tpu_custom_call.1} parent=1 // loop_exit
      _
    %904 = vsyncpa [#allocation6], 1
    %s905 = scalar_lea.sflag [#allocation6], 1
    %906 = vsyncpa %s905, 1
    %907 = vsyncpa [#allocation9], 1
    %908 = vsyncpa [#allocation7], 1
    %s909 = scalar_lea.sflag [#allocation7], 1
    %910 = vsyncpa %s909, 1

</llo_original>
